<compile_context>
chip_gen: v5e
topology: v5e:2x2
jax: 0.10.0
libtpu: 0.0.40
codegen_flags: <defaults>
</compile_context>

<pallas_src>
import math

import jax
import jax.numpy as jnp
from jax.experimental import pallas as pl
from jax.experimental.pallas import tpu as pltpu


# ---------------------------------------------------------------------------
# Kernel
# ---------------------------------------------------------------------------
def _reenactment_kernel(xp_ref, xa_ref, sp_ref, sa_ref, bp_ref, ba_ref,
                        bd_ref, out_ref):
    # xp_ref / xa_ref : (1, H/2, 4*C*W)  dy/parity-unrolled feature operands
    # sp_ref / sa_ref : (4*C*W, 4*C*W)   structured conv weights (grid-invariant)
    # bp_ref / ba_ref : (1, 4*C*W)       wide biases [gamma(par0,par1)|beta(par0,par1)]
    # bd_ref          : (1, 4*C*W, 2*C*W) stacked block-diag features [pose ; app]
    # out_ref         : (1, H/2, 2*C*W)  folded output (lane = par*CW + c*W + x)
    _, Hh, K4 = xp_ref.shape
    CW2 = K4 // 2  # = 2*C*W

    # One MXU matmul per SPADE branch -> [gamma | beta] for both parities.
    conv_p = jnp.dot(xp_ref[0], sp_ref[...],
                     preferred_element_type=jnp.float32) + bp_ref[...]
    conv_a = jnp.dot(xa_ref[0], sa_ref[...],
                     preferred_element_type=jnp.float32) + ba_ref[...]

    gamma_all = jnp.concatenate([conv_p[:, :CW2], conv_a[:, :CW2]], axis=1)
    beta_sum = conv_p[:, CW2:] + conv_a[:, CW2:]

    # Fused per-channel spatial matmul for both branches: (H/2, 4CW) @ (4CW, 2CW).
    res = jnp.dot(gamma_all, bd_ref[0],
                  preferred_element_type=jnp.float32) + beta_sum
    out_ref[0] = res.astype(out_ref.dtype)


# ---------------------------------------------------------------------------
# Wrapper-side operand construction (layout plumbing only, no FLOPs hoisted)
# ---------------------------------------------------------------------------
def _build_xop(f):
    """(N, C, H, W) -> (N, H/2, 4*C*W) dy/parity-unrolled operand.

    lane index = r*C*W + c*W + w, value = f[n, c, 2q + r - 1, w]
    (zero when the referenced row is out of range -> conv y-padding).
    """
    N, C, H, W = f.shape
    f_pad = jnp.pad(f.astype(jnp.float32), ((0, 0), (0, 0), (1, 1), (0, 0)))
    rows = 2 * jnp.arange(H // 2)[:, None] + jnp.arange(4)[None, :]   # (H/2, 4)
    xop = f_pad[:, :, rows, :]                       # (N, C, H/2, 4, W)
    xop = xop.transpose(0, 2, 3, 1, 4)               # (N, H/2, 4, C, W)
    return xop.reshape(N, H // 2, 4 * C * W)


def _build_branch_weight(w_gamma, w_beta, W):
    """Structured weight slab for one SPADE branch: (4*C*W, 4*C*W).

    S[r*CW + ci*W + w1, half*2CW + par*CW + co*W + w2]
        = W_half[co, ci, r - par, w1 - w2 + 1]   (0 where dy/dx out of range)
    x-edge padding is implicit: out-of-range w1 simply has no diagonal entry.
    """
    C = w_gamma.shape[0]
    w_all = jnp.stack([w_gamma, w_beta]).astype(jnp.float32)      # (2,C,C,3,3)
    # Dy[par, r, dy] = 1 iff r == par + dy
    par = jnp.arange(2)[:, None, None]
    r = jnp.arange(4)[None, :, None]
    dy = jnp.arange(3)[None, None, :]
    Dy = (r == par + dy).astype(jnp.float32)                      # (2,4,3)
    # Dx[dx, w1, w2] = 1 iff w1 == w2 + dx - 1  -> shifted identity eye(W, k=1-dx)
    Dx = jnp.stack([jnp.eye(W, k=1 - d, dtype=jnp.float32) for d in range(3)])
    S = jnp.einsum("hoiyx,pry,xab->riahpob", w_all, Dy, Dx)
    return S.reshape(4 * C * W, 4 * C * W)


def _wide_bias(b_gamma, b_beta, W):
    """(1, 4*C*W) wide bias, lanes = [half, par, c, w]."""
    g = jnp.repeat(b_gamma.astype(jnp.float32), W)
    b = jnp.repeat(b_beta.astype(jnp.float32), W)
    return jnp.concatenate([g, g, b, b])[None, :]


def _build_bd_stack(f_p, f_app):
    """Stacked block-diagonal feature operand: (N, 4*C*W, 2*C*W).

    rows  = [branch(pose,app), par, c, w'],  cols = [par, c, x]
    BD[branch=pose][par*CW + c*W + w', par2*CW + c2*W + x]
        = f_p[n, c, w', x] * (c==c2) * (par==par2)
    """
    N, C, H, W = f_p.shape
    eye_c = jnp.eye(C, dtype=jnp.float32)
    eye_p = jnp.eye(2, dtype=jnp.float32)

    def bd(f):
        t = jnp.einsum("ncwx,cd,pq->npcwqdx", f.astype(jnp.float32), eye_c, eye_p)
        return t.reshape(N, 2 * C * W, 2 * C * W)

    return jnp.concatenate([bd(f_p), bd(f_app)], axis=1)          # (N, 4CW, 2CW)


def reenactment_forward(f_p, f_app, params):
    N, C, H, W = f_p.shape
    assert H == W, "torch.matmul on NCHW maps requires square spatial dims"
    assert H % 2 == 0, "h-parity folding requires even H"
    CW = C * W
    Hh = H // 2

    xop_p = _build_xop(f_p)
    xop_a = _build_xop(f_app)
    s_p = _build_branch_weight(params["wg_p"], params["wb_p"], W)
    s_a = _build_branch_weight(params["wg_a"], params["wb_a"], W)
    b_p = _wide_bias(params["bg_p"], params["bb_p"], W)
    b_a = _wide_bias(params["bg_a"], params["bb_a"], W)
    bd = _build_bd_stack(f_p, f_app)

    xop_spec = pl.BlockSpec((1, Hh, 4 * CW), lambda n: (n, 0, 0))
    s_spec = pl.BlockSpec((4 * CW, 4 * CW), lambda n: (0, 0))       # grid-invariant
    bias_spec = pl.BlockSpec((1, 4 * CW), lambda n: (0, 0))         # grid-invariant
    bd_spec = pl.BlockSpec((1, 4 * CW, 2 * CW), lambda n: (n, 0, 0))
    out_spec = pl.BlockSpec((1, Hh, 2 * CW), lambda n: (n, 0, 0))

    grid_spec = pltpu.PrefetchScalarGridSpec(
        num_scalar_prefetch=0,
        grid=(N,),
        in_specs=[xop_spec, xop_spec, s_spec, s_spec,
                  bias_spec, bias_spec, bd_spec],
        out_specs=out_spec,
    )

    out_fold = pl.pallas_call(
        _reenactment_kernel,
        out_shape=jax.ShapeDtypeStruct((N, Hh, 2 * CW), jnp.float32),
        grid_spec=grid_spec,
        # "parallel" lets v7x split the two batches across its two TensorCores;
        # on single-TC v5e/v6e the extra grid step only costs ~0.35us.
        compiler_params=pltpu.CompilerParams(
            dimension_semantics=("parallel",)),
    )(xop_p, xop_a, s_p, s_a, b_p, b_a, bd)

    # folded (N, H/2, [par, c, x]) -> NCHW
    return (out_fold.reshape(N, Hh, 2, C, W)
            .transpose(0, 3, 1, 2, 4)
            .reshape(N, C, H, W))


# ---------------------------------------------------------------------------
# Parameters + pure-JAX reference
# ---------------------------------------------------------------------------
def init_params(key, C, ksize=3):
    """Matches the module __init__: 4 convs (C, C, 3, 3), weight ~ N(0, 0.01),
    PyTorch-default uniform bias."""
    keys = jax.random.split(key, 8)
    bound = 1.0 / math.sqrt(C * ksize * ksize)

    def mk(wk, bk):
        w = 0.01 * jax.random.normal(wk, (C, C, ksize, ksize), jnp.float32)
        b = jax.random.uniform(bk, (C,), jnp.float32, -bound, bound)
        return w, b

    wg_p, bg_p = mk(keys[0], keys[1])
    wb_p, bb_p = mk(keys[2], keys[3])
    wg_a, bg_a = mk(keys[4], keys[5])
    wb_a, bb_a = mk(keys[6], keys[7])
    return dict(wg_p=wg_p, bg_p=bg_p, wb_p=wb_p, bb_p=bb_p,
                wg_a=wg_a, bg_a=bg_a, wb_a=wb_a, bb_a=bb_a)


def reference_forward(f_p, f_app, p):
    def conv(x, w, b):
        y = jax.lax.conv_general_dilated(
            x, w, window_strides=(1, 1), padding=((1, 1), (1, 1)),
            dimension_numbers=("NCHW", "OIHW", "NCHW"))
        return y + b[None, :, None, None]

    gamma_p = conv(f_p, p["wg_p"], p["bg_p"])
    beta_p = conv(f_p, p["wb_p"], p["bb_p"])
    gamma_a = conv(f_app, p["wg_a"], p["bg_a"])
    beta_a = conv(f_app, p["wb_a"], p["bb_a"])
    return (jnp.matmul(gamma_p, f_p) + jnp.matmul(gamma_a, f_app)
            + beta_p + beta_a)


if __name__ == "__main__":
    N, C, H, W = 2, 4, 16, 16
    key = jax.random.PRNGKey(0)
    k_p, k_a, k_w = jax.random.split(key, 3)

    f_p = jax.random.normal(k_p, (N, C, H, W), jnp.float32)
    f_app = jax.random.normal(k_a, (N, C, H, W), jnp.float32)
    params = init_params(k_w, C)

    out = jax.block_until_ready(reenactment_forward(f_p, f_app, params))

    ref = reference_forward(f_p, f_app, params)
    assert out.shape == (N, C, H, W)
    max_err = float(jnp.max(jnp.abs(out - ref)))
    assert jnp.allclose(out, ref, rtol=1e-4, atol=1e-4), (
        f"mismatch vs reference, max abs err = {max_err}")

    print("KERNEL_OK")
</pallas_src>

<mosaic_0001>
module attributes {stable_mosaic.version = 11 : i64} {
  func.func @_reenactment_kernel(%arg0: i32, %arg1: memref<1x8x256xf32, #tpu.memory_space<vmem>>, %arg2: memref<1x8x256xf32, #tpu.memory_space<vmem>>, %arg3: memref<256x256xf32, #tpu.memory_space<vmem>>, %arg4: memref<256x256xf32, #tpu.memory_space<vmem>>, %arg5: memref<1x256xf32, #tpu.memory_space<vmem>>, %arg6: memref<1x256xf32, #tpu.memory_space<vmem>>, %arg7: memref<1x256x128xf32, #tpu.memory_space<vmem>>, %arg8: memref<1x8x128xf32, #tpu.memory_space<vmem>>) attributes {dimension_semantics = [#tpu.dimension_semantics<parallel>], iteration_bounds = array<i64: 2>, scalar_prefetch = 0 : i64, scratch_operands = 0 : i64, tpu.core_type = #tpu.core_type<tc>, window_params = [{transform_indices = @transform_0, window_bounds = array<i64: 1, 8, 256>}, {transform_indices = @transform_1, window_bounds = array<i64: 1, 8, 256>}, {pipeline_mode = #tpu.pipeline_mode<synchronous>, transform_indices = @transform_2, window_bounds = array<i64: 256, 256>}, {pipeline_mode = #tpu.pipeline_mode<synchronous>, transform_indices = @transform_3, window_bounds = array<i64: 256, 256>}, {pipeline_mode = #tpu.pipeline_mode<synchronous>, transform_indices = @transform_4, window_bounds = array<i64: 1, 256>}, {pipeline_mode = #tpu.pipeline_mode<synchronous>, transform_indices = @transform_5, window_bounds = array<i64: 1, 256>}, {transform_indices = @transform_6, window_bounds = array<i64: 1, 256, 128>}, {transform_indices = @transform_7, window_bounds = array<i64: 1, 8, 128>}]} {
    %c0 = arith.constant 0 : index
    %c0_0 = arith.constant 0 : index
    %c0_1 = arith.constant 0 : index
    %0 = vector.load %arg1[%c0, %c0_0, %c0_1] : memref<1x8x256xf32, #tpu.memory_space<vmem>>, vector<1x8x256xf32>
    %1 = vector.shape_cast %0 : vector<1x8x256xf32> to vector<8x256xf32>
    %c0_2 = arith.constant 0 : index
    %c0_3 = arith.constant 0 : index
    %2 = vector.load %arg3[%c0_2, %c0_3] : memref<256x256xf32, #tpu.memory_space<vmem>>, vector<256x256xf32>
    %cst = arith.constant dense<0.000000e+00> : vector<8x256xf32>
    %3 = tpu.matmul %1, %2, %cst {dimension_numbers = #tpu.dot_dimension_numbers<[1], [0], [0], [1], [0, 0, 1, 1], [], []>} : vector<8x256xf32>, vector<256x256xf32>, vector<8x256xf32> -> vector<8x256xf32>
    %c0_4 = arith.constant 0 : index
    %c0_5 = arith.constant 0 : index
    %4 = vector.load %arg5[%c0_4, %c0_5] : memref<1x256xf32, #tpu.memory_space<vmem>>, vector<1x256xf32>
    %5 = vector.broadcast %4 : vector<1x256xf32> to vector<8x256xf32>
    %6 = arith.addf %3, %5 : vector<8x256xf32>
    %c0_6 = arith.constant 0 : index
    %c0_7 = arith.constant 0 : index
    %c0_8 = arith.constant 0 : index
    %7 = vector.load %arg2[%c0_6, %c0_7, %c0_8] : memref<1x8x256xf32, #tpu.memory_space<vmem>>, vector<1x8x256xf32>
    %8 = vector.shape_cast %7 : vector<1x8x256xf32> to vector<8x256xf32>
    %c0_9 = arith.constant 0 : index
    %c0_10 = arith.constant 0 : index
    %9 = vector.load %arg4[%c0_9, %c0_10] : memref<256x256xf32, #tpu.memory_space<vmem>>, vector<256x256xf32>
    %cst_11 = arith.constant dense<0.000000e+00> : vector<8x256xf32>
    %10 = tpu.matmul %8, %9, %cst_11 {dimension_numbers = #tpu.dot_dimension_numbers<[1], [0], [0], [1], [0, 0, 1, 1], [], []>} : vector<8x256xf32>, vector<256x256xf32>, vector<8x256xf32> -> vector<8x256xf32>
    %c0_12 = arith.constant 0 : index
    %c0_13 = arith.constant 0 : index
    %11 = vector.load %arg6[%c0_12, %c0_13] : memref<1x256xf32, #tpu.memory_space<vmem>>, vector<1x256xf32>
    %12 = vector.broadcast %11 : vector<1x256xf32> to vector<8x256xf32>
    %13 = arith.addf %10, %12 : vector<8x256xf32>
    %14 = vector.extract_strided_slice %6 {offsets = [0, 0], sizes = [8, 128], strides = [1, 1]} : vector<8x256xf32> to vector<8x128xf32>
    %15 = vector.extract_strided_slice %13 {offsets = [0, 0], sizes = [8, 128], strides = [1, 1]} : vector<8x256xf32> to vector<8x128xf32>
    %16 = tpu.concatenate %14, %15 in 1 : vector<8x128xf32>, vector<8x128xf32> -> vector<8x256xf32>
    %17 = vector.extract_strided_slice %6 {offsets = [0, 128], sizes = [8, 128], strides = [1, 1]} : vector<8x256xf32> to vector<8x128xf32>
    %18 = vector.extract_strided_slice %13 {offsets = [0, 128], sizes = [8, 128], strides = [1, 1]} : vector<8x256xf32> to vector<8x128xf32>
    %19 = arith.addf %17, %18 : vector<8x128xf32>
    %c0_14 = arith.constant 0 : index
    %c0_15 = arith.constant 0 : index
    %c0_16 = arith.constant 0 : index
    %20 = vector.load %arg7[%c0_14, %c0_15, %c0_16] : memref<1x256x128xf32, #tpu.memory_space<vmem>>, vector<1x256x128xf32>
    %21 = vector.shape_cast %20 : vector<1x256x128xf32> to vector<256x128xf32>
    %cst_17 = arith.constant dense<0.000000e+00> : vector<8x128xf32>
    %22 = tpu.matmul %16, %21, %cst_17 {dimension_numbers = #tpu.dot_dimension_numbers<[1], [0], [0], [1], [0, 0, 1, 1], [], []>} : vector<8x256xf32>, vector<256x128xf32>, vector<8x128xf32> -> vector<8x128xf32>
    %23 = arith.addf %22, %19 : vector<8x128xf32>
    %c0_18 = arith.constant 0 : index
    %c0_19 = arith.constant 0 : index
    %c0_20 = arith.constant 0 : index
    %24 = vector.load %arg8[%c0_18, %c0_19, %c0_20] : memref<1x8x128xf32, #tpu.memory_space<vmem>>, vector<1x8x128xf32>
    %25 = vector.shape_cast %24 : vector<1x8x128xf32> to vector<8x128xf32>
    %26 = vector.shape_cast %23 : vector<8x128xf32> to vector<1x8x128xf32>
    tpu.vector_store %arg8[%c0_18, %c0_19, %c0_20], %26 {strides = array<i32>} : memref<1x8x128xf32, #tpu.memory_space<vmem>>, vector<1x8x128xf32>,
    return
  }
  func.func @transform_0(%arg0: i32) -> (i32, i32, i32) {
    %c0_i32 = arith.constant 0 : i32
    %c0_i32_0 = arith.constant 0 : i32
    %c0_i32_1 = arith.constant 0 : i32
    return %arg0, %c0_i32, %c0_i32_0 : i32, i32, i32
  }
  func.func @transform_1(%arg0: i32) -> (i32, i32, i32) {
    %c0_i32 = arith.constant 0 : i32
    %c0_i32_0 = arith.constant 0 : i32
    %c0_i32_1 = arith.constant 0 : i32
    return %arg0, %c0_i32, %c0_i32_0 : i32, i32, i32
  }
  func.func @transform_2(%arg0: i32) -> (i32, i32) {
    %c0_i32 = arith.constant 0 : i32
    %c0_i32_0 = arith.constant 0 : i32
    %c0_i32_1 = arith.constant 0 : i32
    return %c0_i32, %c0_i32_0 : i32, i32
  }
  func.func @transform_3(%arg0: i32) -> (i32, i32) {
    %c0_i32 = arith.constant 0 : i32
    %c0_i32_0 = arith.constant 0 : i32
    %c0_i32_1 = arith.constant 0 : i32
    return %c0_i32, %c0_i32_0 : i32, i32
  }
  func.func @transform_4(%arg0: i32) -> (i32, i32) {
    %c0_i32 = arith.constant 0 : i32
    %c0_i32_0 = arith.constant 0 : i32
    %c0_i32_1 = arith.constant 0 : i32
    return %c0_i32, %c0_i32_0 : i32, i32
  }
  func.func @transform_5(%arg0: i32) -> (i32, i32) {
    %c0_i32 = arith.constant 0 : i32
    %c0_i32_0 = arith.constant 0 : i32
    %c0_i32_1 = arith.constant 0 : i32
    return %c0_i32, %c0_i32_0 : i32, i32
  }
  func.func @transform_6(%arg0: i32) -> (i32, i32, i32) {
    %c0_i32 = arith.constant 0 : i32
    %c0_i32_0 = arith.constant 0 : i32
    %c0_i32_1 = arith.constant 0 : i32
    return %arg0, %c0_i32, %c0_i32_0 : i32, i32, i32
  }
  func.func @transform_7(%arg0: i32) -> (i32, i32, i32) {
    %c0_i32 = arith.constant 0 : i32
    %c0_i32_0 = arith.constant 0 : i32
    %c0_i32_1 = arith.constant 0 : i32
    return %arg0, %c0_i32, %c0_i32_0 : i32, i32, i32
  }
}

</mosaic_0001>

<llo_original>
// kernel: tpu_custom_call.1
$region0: #{tpu_custom_call.1}
  #allocation0 [shape = 'u32[]', space=smem, size = 0x4, offset = 0x4, fixed_abs, tag = 'smem constant byte address 0x4 - core index']
  #allocation1 [shape = 'u32[72,128]{1,0:T(1,128)}', space=vmem, size = 0x9000, scoped, tag = 'internal scratch']
  %s0 = inlined_call_operand.hbm [shape: f32[2,8,256], index: 0, kind: input, shape index: {}]
  %s1 = inlined_call_operand.hbm [shape: f32[2,8,256], index: 1, kind: input, shape index: {}]
  %s2 = inlined_call_operand.hbm [shape: f32[256,256], index: 2, kind: input, shape index: {}]
  %s3 = inlined_call_operand.hbm [shape: f32[256,256], index: 3, kind: input, shape index: {}]
  %s4 = inlined_call_operand.vmem [shape: f32[1,256], index: 4, kind: input, shape index: {}]
  %s5 = inlined_call_operand.vmem [shape: f32[1,256], index: 5, kind: input, shape index: {}]
  %s6 = inlined_call_operand.hbm [shape: f32[2,256,128], index: 6, kind: input, shape index: {}]
  %s7 = inlined_call_operand.hbm [shape: f32[2,8,128], index: 7, kind: output, shape index: {}]
  %s8 = sld [smem:[#allocation0]]
  $region81: #{tpu_custom_call.1} parent=0
    _
  %s10 = ssub.s32 1, %s8
  %s11 = scalar_select 0, %s10, %s8
  $region1: #{tpu_custom_call.1} parent=0
    #allocation2 [shape = 'u8[16384]{0}', space=vmem, size = 0x4000, scoped, tag = 'input window, operand 0']
    #allocation3 [shape = 's32[2]{0}', space=sflag, size = 0x8, scoped, tag = 'scoped memory for tpu_custom_call.1']
    #allocation4 [shape = 's32[2]{0}', space=sflag, size = 0x8, scoped, tag = 'scoped memory for tpu_custom_call.1']
    #allocation5 [shape = 'u8[16384]{0}', space=vmem, size = 0x4000, scoped, tag = 'input window, operand 1']
    #allocation6 [shape = 's32[2]{0}', space=sflag, size = 0x8, scoped, tag = 'scoped memory for tpu_custom_call.1']
    #allocation7 [shape = 'u8[262144]{0}', space=vmem, size = 0x40000, scoped, tag = 'input window, operand 2, single buffered']
    #allocation8 [shape = 'u8[262144]{0}', space=vmem, size = 0x40000, scoped, tag = 'input window, operand 3, single buffered']
    #allocation9 [shape = 's32[1]{0}', space=sflag, size = 0x4, scoped, tag = 'scoped memory for tpu_custom_call.1']
    #allocation10 [shape = 'u8[262144]{0}', space=vmem, size = 0x40000, scoped, tag = 'input window, operand 6']
    #allocation11 [shape = 'u8[8192]{0}', space=vmem, size = 0x2000, scoped, tag = 'output window, operand 0']
    %12 = vsyncpa [#allocation3], 0
    %s13 = scalar_lea.sflag [#allocation3], 1
    %14 = vsyncpa %s13, 0
    %15 = vsyncpa [#allocation6], 0
    %s16 = scalar_lea.sflag [#allocation6], 1
    %17 = vsyncpa %s16, 0
    %18 = vsyncpa [#allocation9], 0
    %19 = vsyncpa [#allocation4], 0
    %s20 = scalar_lea.sflag [#allocation4], 1
    %21 = vsyncpa %s20, 0
    loop: start=0, step=1, limit=4
    $region2: #{tpu_custom_call.1} parent=1 // loop_pre_header
      _
    $region3: #{tpu_custom_call.1} parent=1 // loop_header
      %s23 = sphi 0, %s27
      %p24 = scmp.ge.s32.totalorder %s23, 4
      %s33 = sphi 0, %s35
      %s36 = sphi 0, %s33
      %s37 = sphi 0, %s36
      %s53 = sphi 0, %s37
      %s59 = sphi 0, %s61
      %s62 = sphi 0, %s59
      %s63 = sphi 0, %s62
      %s79 = sphi 0, %s63
      %s83 = sphi 0, %s83
      %s85 = sphi 0, %s83
      %s86 = sphi 0, %s85
      %s100 = sphi 0, %s86
      %s104 = sphi 0, %s104
      %s106 = sphi 0, %s104
      %s107 = sphi 0, %s106
      %s121 = sphi 0, %s107
      %s125 = sphi 0, %s125
      %s127 = sphi 0, %s125
      %s128 = sphi 0, %s127
      %s142 = sphi 0, %s128
      %s146 = sphi 0, %s146
      %s148 = sphi 0, %s146
      %s149 = sphi 0, %s148
      %s163 = sphi 0, %s149
      %s169 = sphi 0, %s171
      %s172 = sphi 0, %s169
      %s173 = sphi 0, %s172
      %s189 = sphi 0, %s173
      %s195 = sphi 0, %s197
      %s198 = sphi 0, %s195
      %s199 = sphi 0, %s198
      %s215 = sphi 0, %s199
    $region4: #{tpu_custom_call.1} parent=1 // loop_header_branch
      %26 = sbr.rel (%p24) target = $region8
    $region5: #{tpu_custom_call.1} parent=1 // loop_body
      %s28 = ssub.s32 %s23, 1
      %s29 = ssub.s32 %s23, 2
      %s30 = sadd.s32 %s23, 1
      %s31 = ssub.s32 %s23, %s30
      %p32 = scmp.eq.s32.totalorder %s31, 0
      %s34 = sadd.s32 %s33, 1
      %s35 = scalar_select %p32, %s33, %s34
      %p38 = pneg %p32
      %p39 = scmp.eq.s32.totalorder %s23, 1
      %p40 = por %p38, %p39
      %p41 = scmp.ne.s32.totalorder %s33, %s36
      %p42 = scmp.eq.s32.totalorder %s23, 0
      %p43 = por %p41, %p42
      %p44 = scmp.ne.s32.totalorder %s33, %s36
      %p45 = scmp.eq.s32.totalorder %s28, 1
      %p46 = por %p44, %p45
      %p47 = scmp.ne.s32.totalorder %s36, %s37
      %p48 = scmp.eq.s32.totalorder %s28, 0
      %p49 = por %p47, %p48
      %p50 = scmp.ne.s32.totalorder %s36, %s37
      %p51 = scmp.eq.s32.totalorder %s29, 1
      %p52 = por %p50, %p51
      %p54 = scmp.ne.s32.totalorder %s37, %s53
      %p55 = scmp.eq.s32.totalorder %s29, 0
      %p56 = por %p54, %p55
      %s57 = ssub.s32 %s23, %s30
      %p58 = scmp.eq.s32.totalorder %s57, 0
      %s60 = sadd.s32 %s59, 1
      %s61 = scalar_select %p58, %s59, %s60
      %p64 = pneg %p58
      %p65 = scmp.eq.s32.totalorder %s23, 1
      %p66 = por %p64, %p65
      %p67 = scmp.ne.s32.totalorder %s59, %s62
      %p68 = scmp.eq.s32.totalorder %s23, 0
      %p69 = por %p67, %p68
      %p70 = scmp.ne.s32.totalorder %s59, %s62
      %p71 = scmp.eq.s32.totalorder %s28, 1
      %p72 = por %p70, %p71
      %p73 = scmp.ne.s32.totalorder %s62, %s63
      %p74 = scmp.eq.s32.totalorder %s28, 0
      %p75 = por %p73, %p74
      %p76 = scmp.ne.s32.totalorder %s62, %s63
      %p77 = scmp.eq.s32.totalorder %s29, 1
      %p78 = por %p76, %p77
      %p80 = scmp.ne.s32.totalorder %s63, %s79
      %p81 = scmp.eq.s32.totalorder %s29, 0
      %p82 = por %p80, %p81
      %s84 = sadd.s32 %s83, 1
      %p87 = scmp.eq.s32.totalorder %s23, 1
      %p88 = scmp.ne.s32.totalorder %s83, %s85
      %p89 = scmp.eq.s32.totalorder %s23, 0
      %p90 = por %p88, %p89
      %p91 = scmp.ne.s32.totalorder %s83, %s85
      %p92 = scmp.eq.s32.totalorder %s28, 1
      %p93 = por %p91, %p92
      %p94 = scmp.ne.s32.totalorder %s85, %s86
      %p95 = scmp.eq.s32.totalorder %s28, 0
      %p96 = por %p94, %p95
      %p97 = scmp.ne.s32.totalorder %s85, %s86
      %p98 = scmp.eq.s32.totalorder %s29, 1
      %p99 = por %p97, %p98
      %p101 = scmp.ne.s32.totalorder %s86, %s100
      %p102 = scmp.eq.s32.totalorder %s29, 0
      %p103 = por %p101, %p102
      %s105 = sadd.s32 %s104, 1
      %p108 = scmp.eq.s32.totalorder %s23, 1
      %p109 = scmp.ne.s32.totalorder %s104, %s106
      %p110 = scmp.eq.s32.totalorder %s23, 0
      %p111 = por %p109, %p110
      %p112 = scmp.ne.s32.totalorder %s104, %s106
      %p113 = scmp.eq.s32.totalorder %s28, 1
      %p114 = por %p112, %p113
      %p115 = scmp.ne.s32.totalorder %s106, %s107
      %p116 = scmp.eq.s32.totalorder %s28, 0
      %p117 = por %p115, %p116
      %p118 = scmp.ne.s32.totalorder %s106, %s107
      %p119 = scmp.eq.s32.totalorder %s29, 1
      %p120 = por %p118, %p119
      %p122 = scmp.ne.s32.totalorder %s107, %s121
      %p123 = scmp.eq.s32.totalorder %s29, 0
      %p124 = por %p122, %p123
      %s126 = sadd.s32 %s125, 1
      %p129 = scmp.eq.s32.totalorder %s23, 1
      %p130 = scmp.ne.s32.totalorder %s125, %s127
      %p131 = scmp.eq.s32.totalorder %s23, 0
      %p132 = por %p130, %p131
      %p133 = scmp.ne.s32.totalorder %s125, %s127
      %p134 = scmp.eq.s32.totalorder %s28, 1
      %p135 = por %p133, %p134
      %p136 = scmp.ne.s32.totalorder %s127, %s128
      %p137 = scmp.eq.s32.totalorder %s28, 0
      %p138 = por %p136, %p137
      %p139 = scmp.ne.s32.totalorder %s127, %s128
      %p140 = scmp.eq.s32.totalorder %s29, 1
      %p141 = por %p139, %p140
      %p143 = scmp.ne.s32.totalorder %s128, %s142
      %p144 = scmp.eq.s32.totalorder %s29, 0
      %p145 = por %p143, %p144
      %s147 = sadd.s32 %s146, 1
      %p150 = scmp.eq.s32.totalorder %s23, 1
      %p151 = scmp.ne.s32.totalorder %s146, %s148
      %p152 = scmp.eq.s32.totalorder %s23, 0
      %p153 = por %p151, %p152
      %p154 = scmp.ne.s32.totalorder %s146, %s148
      %p155 = scmp.eq.s32.totalorder %s28, 1
      %p156 = por %p154, %p155
      %p157 = scmp.ne.s32.totalorder %s148, %s149
      %p158 = scmp.eq.s32.totalorder %s28, 0
      %p159 = por %p157, %p158
      %p160 = scmp.ne.s32.totalorder %s148, %s149
      %p161 = scmp.eq.s32.totalorder %s29, 1
      %p162 = por %p160, %p161
      %p164 = scmp.ne.s32.totalorder %s149, %s163
      %p165 = scmp.eq.s32.totalorder %s29, 0
      %p166 = por %p164, %p165
      %s167 = ssub.s32 %s23, %s30
      %p168 = scmp.eq.s32.totalorder %s167, 0
      %s170 = sadd.s32 %s169, 1
      %s171 = scalar_select %p168, %s169, %s170
      %p174 = pneg %p168
      %p175 = scmp.eq.s32.totalorder %s23, 1
      %p176 = por %p174, %p175
      %p177 = scmp.ne.s32.totalorder %s169, %s172
      %p178 = scmp.eq.s32.totalorder %s23, 0
      %p179 = por %p177, %p178
      %p180 = scmp.ne.s32.totalorder %s169, %s172
      %p181 = scmp.eq.s32.totalorder %s28, 1
      %p182 = por %p180, %p181
      %p183 = scmp.ne.s32.totalorder %s172, %s173
      %p184 = scmp.eq.s32.totalorder %s28, 0
      %p185 = por %p183, %p184
      %p186 = scmp.ne.s32.totalorder %s172, %s173
      %p187 = scmp.eq.s32.totalorder %s29, 1
      %p188 = por %p186, %p187
      %p190 = scmp.ne.s32.totalorder %s173, %s189
      %p191 = scmp.eq.s32.totalorder %s29, 0
      %p192 = por %p190, %p191
      %s193 = ssub.s32 %s23, %s30
      %p194 = scmp.eq.s32.totalorder %s193, 0
      %s196 = sadd.s32 %s195, 1
      %s197 = scalar_select %p194, %s195, %s196
      %p200 = pneg %p194
      %p201 = scmp.eq.s32.totalorder %s23, 1
      %p202 = por %p200, %p201
      %p203 = scmp.ne.s32.totalorder %s195, %s198
      %p204 = scmp.eq.s32.totalorder %s23, 0
      %p205 = por %p203, %p204
      %p206 = scmp.ne.s32.totalorder %s195, %s198
      %p207 = scmp.eq.s32.totalorder %s28, 1
      %p208 = por %p206, %p207
      %p209 = scmp.ne.s32.totalorder %s198, %s199
      %p210 = scmp.eq.s32.totalorder %s28, 0
      %p211 = por %p209, %p210
      %p212 = scmp.ne.s32.totalorder %s198, %s199
      %p213 = scmp.eq.s32.totalorder %s29, 1
      %p214 = por %p212, %p213
      %p216 = scmp.ne.s32.totalorder %s199, %s215
      %p217 = scmp.eq.s32.totalorder %s29, 0
      %p218 = por %p216, %p217
      %p219 = scmp.le.s32.totalorder 1, %s23
      %p220 = scmp.lt.s32.totalorder %s23, 3
      %p221 = pnand %p219, %p220
      %p222 = pneg %p221
      // Predicated region
      $region9: #{tpu_custom_call.1} parent=5 // pred_check
        _
      $region10: #{tpu_custom_call.1} parent=5 // pred_check_branch
        %224 = sbr.rel (%p221) target = $region12
      $region11: #{tpu_custom_call.1} parent=5 // pred_region
        %s225 = ssub.s32 %s23, 1
        // Predicated region
        $region13: #{tpu_custom_call.1} parent=11 // pred_check
          %p226 = pneg %p96
        $region14: #{tpu_custom_call.1} parent=11 // pred_check_branch
          %228 = sbr.rel (%p226) target = $region16
        $region15: #{tpu_custom_call.1} parent=11 // pred_region
          %230 = vsyncadd [#allocation6], 0
          %s231 = sshll.u32 %s2, 4
          %s232 = int_to_ptr.hbm [resolvable:$true] %s231
          %s233 = sshll.u32 [#allocation7], 4
          %s234 = int_to_ptr.vmem [resolvable:$true] %s233
          %239 = dma.hbm_to_vmem [thread:$0]  %s232, 8192, %s234, [#allocation6], 256, 256, 16
        $region16: #{tpu_custom_call.1} parent=11 // pred_fallthru
          _
        // Predicated region
        $region17: #{tpu_custom_call.1} parent=11 // pred_check
          %p240 = pneg %p117
        $region18: #{tpu_custom_call.1} parent=11 // pred_check_branch
          %242 = sbr.rel (%p240) target = $region20
        $region19: #{tpu_custom_call.1} parent=11 // pred_region
          %244 = vsyncadd [#allocation9], 0
          %s245 = sshll.u32 %s3, 4
          %s246 = int_to_ptr.hbm [resolvable:$true] %s245
          %s247 = sshll.u32 [#allocation8], 4
          %s248 = int_to_ptr.vmem [resolvable:$true] %s247
          %253 = dma.hbm_to_vmem [thread:$0]  %s246, 8192, %s248, [#allocation9], 256, 256, 16
        $region20: #{tpu_custom_call.1} parent=11 // pred_fallthru
          _
        // Predicated region
        $region21: #{tpu_custom_call.1} parent=11 // pred_check
          %p254 = pneg %p138
        $region22: #{tpu_custom_call.1} parent=11 // pred_check_branch
          %256 = sbr.rel (%p254) target = $region24
        $region23: #{tpu_custom_call.1} parent=11 // pred_region
          _
        $region24: #{tpu_custom_call.1} parent=11 // pred_fallthru
          _
        // Predicated region
        $region25: #{tpu_custom_call.1} parent=11 // pred_check
          %p257 = pneg %p159
        $region26: #{tpu_custom_call.1} parent=11 // pred_check_branch
          %259 = sbr.rel (%p257) target = $region28
        $region27: #{tpu_custom_call.1} parent=11 // pred_region
          _
        $region28: #{tpu_custom_call.1} parent=11 // pred_fallthru
          _
      $region12: #{tpu_custom_call.1} parent=5 // pred_fallthru
        _
      %p260 = scmp.lt.s32.totalorder %s23, 2
      // Predicated region
      $region29: #{tpu_custom_call.1} parent=5 // pred_check
        %p261 = pneg %p260
      $region30: #{tpu_custom_call.1} parent=5 // pred_check_branch
        %263 = sbr.rel (%p261) target = $region32
      $region31: #{tpu_custom_call.1} parent=5 // pred_region
        // Predicated region
        $region33: #{tpu_custom_call.1} parent=31 // pred_check
          %p264 = pneg %p43
        $region34: #{tpu_custom_call.1} parent=31 // pred_check_branch
          %266 = sbr.rel (%p264) target = $region36
        $region35: #{tpu_custom_call.1} parent=31 // pred_region
          %s267 = sand.u32 %s23, 1
          %s268 = scalar_lea.sflag [#allocation3], %s267
          %s269 = sand.u32 %s33, 1
          %s270 = smul.addr %s269, 16
          %s271 = scalar_lea.vmem [#allocation2], %s270
          %273 = vsyncadd %s268, 0
          %s274 = smul.addr %s23, 2
          %s275 = smul.addr %s274, 8
          %s276 = scalar_lea.hbm %s0, %s275
          %s278 = sshll.u32 %s276, 4
          %s279 = int_to_ptr.hbm [resolvable:$true] %s278
          %s280 = sshll.u32 %s271, 4
          %s281 = int_to_ptr.vmem [resolvable:$true] %s280
          %283 = dma.hbm_to_vmem [thread:$0]  %s279, 256, %s281, %s268
        $region36: #{tpu_custom_call.1} parent=31 // pred_fallthru
          _
        // Predicated region
        $region37: #{tpu_custom_call.1} parent=31 // pred_check
          %p284 = pneg %p69
        $region38: #{tpu_custom_call.1} parent=31 // pred_check_branch
          %286 = sbr.rel (%p284) target = $region40
        $region39: #{tpu_custom_call.1} parent=31 // pred_region
          %s287 = sand.u32 %s23, 1
          %s288 = scalar_lea.sflag [#allocation6], %s287
          %s289 = sand.u32 %s59, 1
          %s290 = smul.addr %s289, 16
          %s291 = scalar_lea.vmem [#allocation5], %s290
          %293 = vsyncadd %s288, 0
          %s294 = smul.addr %s23, 2
          %s295 = smul.addr %s294, 8
          %s296 = scalar_lea.hbm %s1, %s295
          %s298 = sshll.u32 %s296, 4
          %s299 = int_to_ptr.hbm [resolvable:$true] %s298
          %s300 = sshll.u32 %s291, 4
          %s301 = int_to_ptr.vmem [resolvable:$true] %s300
          %303 = dma.hbm_to_vmem [thread:$0]  %s299, 256, %s301, %s288
        $region40: #{tpu_custom_call.1} parent=31 // pred_fallthru
          _
        // Predicated region
        $region41: #{tpu_custom_call.1} parent=31 // pred_check
          %p304 = pneg %p179
        $region42: #{tpu_custom_call.1} parent=31 // pred_check_branch
          %306 = sbr.rel (%p304) target = $region44
        $region43: #{tpu_custom_call.1} parent=31 // pred_region
          %s307 = sand.u32 %s23, 1
          %s308 = scalar_lea.sflag [#allocation3], %s307
          %s309 = sand.u32 %s169, 1
          %s310 = smul.addr %s309, 256
          %s311 = scalar_lea.vmem [#allocation10], %s310
          %313 = vsyncadd %s308, 0
          %s314 = smul.addr %s23, 32
          %s315 = smul.addr %s314, 8
          %s316 = scalar_lea.hbm %s6, %s315
          %s317 = sshll.u32 %s316, 4
          %s318 = int_to_ptr.hbm [resolvable:$true] %s317
          %s319 = sshll.u32 %s311, 4
          %s320 = int_to_ptr.vmem [resolvable:$true] %s319
          %325 = dma.hbm_to_vmem [thread:$0]  %s318, 4096, %s320, %s308, 128, 128, 8
        $region44: #{tpu_custom_call.1} parent=31 // pred_fallthru
          _
      $region32: #{tpu_custom_call.1} parent=5 // pred_fallthru
        _
      %p326 = scmp.le.s32.totalorder 1, %s23
      %p327 = scmp.lt.s32.totalorder %s23, 3
      %p328 = pnand %p326, %p327
      %p329 = pneg %p328
      // Predicated region
      $region45: #{tpu_custom_call.1} parent=5 // pred_check
        _
      $region46: #{tpu_custom_call.1} parent=5 // pred_check_branch
        %331 = sbr.rel (%p328) target = $region48
      $region47: #{tpu_custom_call.1} parent=5 // pred_region
        %s332 = ssub.s32 %s23, 1
        %s333 = sand.u32 %s28, 1
        %s334 = scalar_lea.sflag [#allocation3], %s333
        %s335 = sand.u32 %s36, 1
        %s336 = smul.addr %s335, 16
        %s337 = scalar_lea.vmem [#allocation2], %s336
        // Predicated region
        $region49: #{tpu_custom_call.1} parent=47 // pred_check
          %p338 = pneg %p49
        $region50: #{tpu_custom_call.1} parent=47 // pred_check_branch
          %340 = sbr.rel (%p338) target = $region52
        $region51: #{tpu_custom_call.1} parent=47 // pred_region
          %342 = dma.done %s334, 256
        $region52: #{tpu_custom_call.1} parent=47 // pred_fallthru
          _
        %s343 = sand.u32 %s28, 1
        %s344 = scalar_lea.sflag [#allocation6], %s343
        %s345 = sand.u32 %s62, 1
        %s346 = smul.addr %s345, 16
        %s347 = scalar_lea.vmem [#allocation5], %s346
        // Predicated region
        $region53: #{tpu_custom_call.1} parent=47 // pred_check
          %p348 = pneg %p75
        $region54: #{tpu_custom_call.1} parent=47 // pred_check_branch
          %350 = sbr.rel (%p348) target = $region56
        $region55: #{tpu_custom_call.1} parent=47 // pred_region
          %352 = dma.done %s344, 256
        $region56: #{tpu_custom_call.1} parent=47 // pred_fallthru
          _
        // Predicated region
        $region57: #{tpu_custom_call.1} parent=47 // pred_check
          %p353 = pneg %p96
        $region58: #{tpu_custom_call.1} parent=47 // pred_check_branch
          %355 = sbr.rel (%p353) target = $region60
        $region59: #{tpu_custom_call.1} parent=47 // pred_region
          %357 = dma.done [#allocation6], 8192
        $region60: #{tpu_custom_call.1} parent=47 // pred_fallthru
          _
        // Predicated region
        $region61: #{tpu_custom_call.1} parent=47 // pred_check
          %p358 = pneg %p117
        $region62: #{tpu_custom_call.1} parent=47 // pred_check_branch
          %360 = sbr.rel (%p358) target = $region64
        $region63: #{tpu_custom_call.1} parent=47 // pred_region
          %362 = dma.done [#allocation9], 8192
        $region64: #{tpu_custom_call.1} parent=47 // pred_fallthru
          _
        %s363 = sand.u32 %s28, 1
        %s364 = scalar_lea.sflag [#allocation3], %s363
        %s365 = sand.u32 %s172, 1
        %s366 = smul.addr %s365, 256
        %s367 = scalar_lea.vmem [#allocation10], %s366
        // Predicated region
        $region65: #{tpu_custom_call.1} parent=47 // pred_check
          %p368 = pneg %p185
        $region66: #{tpu_custom_call.1} parent=47 // pred_check_branch
          %370 = sbr.rel (%p368) target = $region68
        $region67: #{tpu_custom_call.1} parent=47 // pred_region
          %372 = dma.done %s364, 4096
        $region68: #{tpu_custom_call.1} parent=47 // pred_fallthru
          _
        %s373 = sand.u32 %s28, 1
        %s374 = scalar_lea.sflag [#allocation3], %s373
        %s375 = sand.u32 %s36, 1
        %s376 = smul.addr %s375, 16
        %s377 = scalar_lea.vmem [#allocation2], %s376
        %p378 = pneg %p49
        %p379 = pneg %p46
        %s380 = sand.u32 %s28, 1
        %s381 = scalar_lea.sflag [#allocation6], %s380
        %s382 = sand.u32 %s62, 1
        %s383 = smul.addr %s382, 16
        %s384 = scalar_lea.vmem [#allocation5], %s383
        %p385 = pneg %p75
        %p386 = pneg %p72
        %p387 = pneg %p96
        %p388 = pneg %p93
        %p389 = pneg %p117
        %p390 = pneg %p114
        %p391 = pneg %p138
        %p392 = pneg %p135
        %p393 = pneg %p159
        %p394 = pneg %p156
        %s395 = sand.u32 %s28, 1
        %s396 = scalar_lea.sflag [#allocation3], %s395
        %s397 = sand.u32 %s172, 1
        %s398 = smul.addr %s397, 256
        %s399 = scalar_lea.vmem [#allocation10], %s398
        %p400 = pneg %p185
        %p401 = pneg %p182
        %p402 = pneg %p211
        %p403 = pneg %p208
        %s404 = sand.u32 %s198, 1
        %s405 = scalar_lea.sflag [#allocation4], %s404
        %s406 = sand.u32 %s198, 1
        %s407 = smul.addr %s406, 8
        %s408 = scalar_lea.vmem [#allocation11], %s407
        %v409 = vld [vmem:[%s337] sm:$0xff]
        %v410 = vld [vmem:[%s337 + $0x8] sm:$0xff]
        %v411 = vld [vmem:[#allocation7] sm:$0xff]
        %v412 = vld [vmem:[#allocation7 + $0x8] sm:$0xff]
        %v413 = vld [vmem:[#allocation7 + $0x10] sm:$0xff]
        %v414 = vld [vmem:[#allocation7 + $0x18] sm:$0xff]
        %v415 = vld [vmem:[#allocation7 + $0x20] sm:$0xff]
        %v416 = vld [vmem:[#allocation7 + $0x28] sm:$0xff]
        %v417 = vld [vmem:[#allocation7 + $0x30] sm:$0xff]
        %v418 = vld [vmem:[#allocation7 + $0x38] sm:$0xff]
        %v419 = vld [vmem:[#allocation7 + $0x40] sm:$0xff]
        %v420 = vld [vmem:[#allocation7 + $0x48] sm:$0xff]
        %v421 = vld [vmem:[#allocation7 + $0x50] sm:$0xff]
        %v422 = vld [vmem:[#allocation7 + $0x58] sm:$0xff]
        %v423 = vld [vmem:[#allocation7 + $0x60] sm:$0xff]
        %v424 = vld [vmem:[#allocation7 + $0x68] sm:$0xff]
        %v425 = vld [vmem:[#allocation7 + $0x70] sm:$0xff]
        %v426 = vld [vmem:[#allocation7 + $0x78] sm:$0xff]
        %v427 = vld [vmem:[#allocation7 + $0x80] sm:$0xff]
        %v428 = vld [vmem:[#allocation7 + $0x88] sm:$0xff]
        %v429 = vld [vmem:[#allocation7 + $0x90] sm:$0xff]
        %v430 = vld [vmem:[#allocation7 + $0x98] sm:$0xff]
        %v431 = vld [vmem:[#allocation7 + $0xa0] sm:$0xff]
        %v432 = vld [vmem:[#allocation7 + $0xa8] sm:$0xff]
        %v433 = vld [vmem:[#allocation7 + $0xb0] sm:$0xff]
        %v434 = vld [vmem:[#allocation7 + $0xb8] sm:$0xff]
        %v435 = vld [vmem:[#allocation7 + $0xc0] sm:$0xff]
        %v436 = vld [vmem:[#allocation7 + $0xc8] sm:$0xff]
        %v437 = vld [vmem:[#allocation7 + $0xd0] sm:$0xff]
        %v438 = vld [vmem:[#allocation7 + $0xd8] sm:$0xff]
        %v439 = vld [vmem:[#allocation7 + $0xe0] sm:$0xff]
        %v440 = vld [vmem:[#allocation7 + $0xe8] sm:$0xff]
        %v441 = vld [vmem:[#allocation7 + $0xf0] sm:$0xff]
        %v442 = vld [vmem:[#allocation7 + $0xf8] sm:$0xff]
        %v443 = vld [vmem:[#allocation7 + $0x100] sm:$0xff]
        %v444 = vld [vmem:[#allocation7 + $0x108] sm:$0xff]
        %v445 = vld [vmem:[#allocation7 + $0x110] sm:$0xff]
        %v446 = vld [vmem:[#allocation7 + $0x118] sm:$0xff]
        %v447 = vld [vmem:[#allocation7 + $0x120] sm:$0xff]
        %v448 = vld [vmem:[#allocation7 + $0x128] sm:$0xff]
        %v449 = vld [vmem:[#allocation7 + $0x130] sm:$0xff]
        %v450 = vld [vmem:[#allocation7 + $0x138] sm:$0xff]
        %v451 = vld [vmem:[#allocation7 + $0x140] sm:$0xff]
        %v452 = vld [vmem:[#allocation7 + $0x148] sm:$0xff]
        %v453 = vld [vmem:[#allocation7 + $0x150] sm:$0xff]
        %v454 = vld [vmem:[#allocation7 + $0x158] sm:$0xff]
        %v455 = vld [vmem:[#allocation7 + $0x160] sm:$0xff]
        %v456 = vld [vmem:[#allocation7 + $0x168] sm:$0xff]
        %v457 = vld [vmem:[#allocation7 + $0x170] sm:$0xff]
        %v458 = vld [vmem:[#allocation7 + $0x178] sm:$0xff]
        %v459 = vld [vmem:[#allocation7 + $0x180] sm:$0xff]
        %v460 = vld [vmem:[#allocation7 + $0x188] sm:$0xff]
        %v461 = vld [vmem:[#allocation7 + $0x190] sm:$0xff]
        %v462 = vld [vmem:[#allocation7 + $0x198] sm:$0xff]
        %v463 = vld [vmem:[#allocation7 + $0x1a0] sm:$0xff]
        %v464 = vld [vmem:[#allocation7 + $0x1a8] sm:$0xff]
        %v465 = vld [vmem:[#allocation7 + $0x1b0] sm:$0xff]
        %v466 = vld [vmem:[#allocation7 + $0x1b8] sm:$0xff]
        %v467 = vld [vmem:[#allocation7 + $0x1c0] sm:$0xff]
        %v468 = vld [vmem:[#allocation7 + $0x1c8] sm:$0xff]
        %v469 = vld [vmem:[#allocation7 + $0x1d0] sm:$0xff]
        %v470 = vld [vmem:[#allocation7 + $0x1d8] sm:$0xff]
        %v471 = vld [vmem:[#allocation7 + $0x1e0] sm:$0xff]
        %v472 = vld [vmem:[#allocation7 + $0x1e8] sm:$0xff]
        %v473 = vld [vmem:[#allocation7 + $0x1f0] sm:$0xff]
        %v474 = vld [vmem:[#allocation7 + $0x1f8] sm:$0xff]
        %v475 = vld [vmem:[%s4] sm:$0x3]
        %v477 = vperm.slane %v475, 0
        %v478 = vperm.slane %v475, 1
        %481 = vmatpush.msra.mxu0 %v441
        %482 = vmatpush.msra.mxu0 %v439
        %483 = vmatpush.msra.mxu0 %v437
        %484 = vmatpush.msra.mxu0 %v435
        %485 = vmatpush.msra.mxu0 %v433
        %486 = vmatpush.msra.mxu0 %v431
        %487 = vmatpush.msra.mxu0 %v429
        %488 = vmatpush.msra.mxu0 %v427
        %489 = vmatpush.msra.mxu0 %v425
        %490 = vmatpush.msra.mxu0 %v423
        %491 = vmatpush.msra.mxu0 %v421
        %492 = vmatpush.msra.mxu0 %v419
        %493 = vmatpush.msra.mxu0 %v417
        %494 = vmatpush.msra.mxu0 %v415
        %495 = vmatpush.msra.mxu0 %v413
        %496 = vmatpush.msra.mxu0 %v411
        %497 = vmatmul.f32.gmra.mxu0 %v409
        %v498 = vpop.f32.mrf.mxu0
        %v499 = vadd.f32 %v477, %v498
        %500 = vdwg.mxu0
        %501 = vmatpush.msra.mxu0 %v473
        %502 = vmatpush.msra.mxu0 %v471
        %503 = vmatpush.msra.mxu0 %v469
        %504 = vmatpush.msra.mxu0 %v467
        %505 = vmatpush.msra.mxu0 %v465
        %506 = vmatpush.msra.mxu0 %v463
        %507 = vmatpush.msra.mxu0 %v461
        %508 = vmatpush.msra.mxu0 %v459
        %509 = vmatpush.msra.mxu0 %v457
        %510 = vmatpush.msra.mxu0 %v455
        %511 = vmatpush.msra.mxu0 %v453
        %512 = vmatpush.msra.mxu0 %v451
        %513 = vmatpush.msra.mxu0 %v449
        %514 = vmatpush.msra.mxu0 %v447
        %515 = vmatpush.msra.mxu0 %v445
        %516 = vmatpush.msra.mxu0 %v443
        %517 = vmatmul.f32.gmra.mxu0 %v410
        %v518 = vpop.f32.mrf.mxu0
        %v519 = vadd.f32 %v499, %v518
        %520 = vdwg.mxu0
        %521 = vmatpush.msra.mxu0 %v442
        %522 = vmatpush.msra.mxu0 %v440
        %523 = vmatpush.msra.mxu0 %v438
        %524 = vmatpush.msra.mxu0 %v436
        %525 = vmatpush.msra.mxu0 %v434
        %526 = vmatpush.msra.mxu0 %v432
        %527 = vmatpush.msra.mxu0 %v430
        %528 = vmatpush.msra.mxu0 %v428
        %529 = vmatpush.msra.mxu0 %v426
        %530 = vmatpush.msra.mxu0 %v424
        %531 = vmatpush.msra.mxu0 %v422
        %532 = vmatpush.msra.mxu0 %v420
        %533 = vmatpush.msra.mxu0 %v418
        %534 = vmatpush.msra.mxu0 %v416
        %535 = vmatpush.msra.mxu0 %v414
        %536 = vmatpush.msra.mxu0 %v412
        %537 = vmatmul.f32.gmra.mxu0 %v409
        %v538 = vpop.f32.mrf.mxu0
        %v539 = vadd.f32 %v478, %v538
        %540 = vdwg.mxu0
        %541 = vmatpush.msra.mxu0 %v474
        %542 = vmatpush.msra.mxu0 %v472
        %543 = vmatpush.msra.mxu0 %v470
        %544 = vmatpush.msra.mxu0 %v468
        %545 = vmatpush.msra.mxu0 %v466
        %546 = vmatpush.msra.mxu0 %v464
        %547 = vmatpush.msra.mxu0 %v462
        %548 = vmatpush.msra.mxu0 %v460
        %549 = vmatpush.msra.mxu0 %v458
        %550 = vmatpush.msra.mxu0 %v456
        %551 = vmatpush.msra.mxu0 %v454
        %552 = vmatpush.msra.mxu0 %v452
        %553 = vmatpush.msra.mxu0 %v450
        %554 = vmatpush.msra.mxu0 %v448
        %555 = vmatpush.msra.mxu0 %v446
        %556 = vmatpush.msra.mxu0 %v444
        %557 = vmatmul.f32.gmra.mxu0 %v410
        %v558 = vpop.f32.mrf.mxu0
        %v559 = vadd.f32 %v539, %v558
        %560 = vdwg.mxu0
        %v561 = vld [vmem:[%s347] sm:$0xff]
        %v562 = vld [vmem:[%s347 + $0x8] sm:$0xff]
        %v563 = vld [vmem:[#allocation8] sm:$0xff]
        %v564 = vld [vmem:[#allocation8 + $0x8] sm:$0xff]
        %v565 = vld [vmem:[#allocation8 + $0x10] sm:$0xff]
        %v566 = vld [vmem:[#allocation8 + $0x18] sm:$0xff]
        %v567 = vld [vmem:[#allocation8 + $0x20] sm:$0xff]
        %v568 = vld [vmem:[#allocation8 + $0x28] sm:$0xff]
        %v569 = vld [vmem:[#allocation8 + $0x30] sm:$0xff]
        %v570 = vld [vmem:[#allocation8 + $0x38] sm:$0xff]
        %v571 = vld [vmem:[#allocation8 + $0x40] sm:$0xff]
        %v572 = vld [vmem:[#allocation8 + $0x48] sm:$0xff]
        %v573 = vld [vmem:[#allocation8 + $0x50] sm:$0xff]
        %v574 = vld [vmem:[#allocation8 + $0x58] sm:$0xff]
        %v575 = vld [vmem:[#allocation8 + $0x60] sm:$0xff]
        %v576 = vld [vmem:[#allocation8 + $0x68] sm:$0xff]
        %v577 = vld [vmem:[#allocation8 + $0x70] sm:$0xff]
        %v578 = vld [vmem:[#allocation8 + $0x78] sm:$0xff]
        %v579 = vld [vmem:[#allocation8 + $0x80] sm:$0xff]
        %v580 = vld [vmem:[#allocation8 + $0x88] sm:$0xff]
        %v581 = vld [vmem:[#allocation8 + $0x90] sm:$0xff]
        %v582 = vld [vmem:[#allocation8 + $0x98] sm:$0xff]
        %v583 = vld [vmem:[#allocation8 + $0xa0] sm:$0xff]
        %v584 = vld [vmem:[#allocation8 + $0xa8] sm:$0xff]
        %v585 = vld [vmem:[#allocation8 + $0xb0] sm:$0xff]
        %v586 = vld [vmem:[#allocation8 + $0xb8] sm:$0xff]
        %v587 = vld [vmem:[#allocation8 + $0xc0] sm:$0xff]
        %v588 = vld [vmem:[#allocation8 + $0xc8] sm:$0xff]
        %v589 = vld [vmem:[#allocation8 + $0xd0] sm:$0xff]
        %v590 = vld [vmem:[#allocation8 + $0xd8] sm:$0xff]
        %v591 = vld [vmem:[#allocation8 + $0xe0] sm:$0xff]
        %v592 = vld [vmem:[#allocation8 + $0xe8] sm:$0xff]
        %v593 = vld [vmem:[#allocation8 + $0xf0] sm:$0xff]
        %v594 = vld [vmem:[#allocation8 + $0xf8] sm:$0xff]
        %v595 = vld [vmem:[#allocation8 + $0x100] sm:$0xff]
        %v596 = vld [vmem:[#allocation8 + $0x108] sm:$0xff]
        %v597 = vld [vmem:[#allocation8 + $0x110] sm:$0xff]
        %v598 = vld [vmem:[#allocation8 + $0x118] sm:$0xff]
        %v599 = vld [vmem:[#allocation8 + $0x120] sm:$0xff]
        %v600 = vld [vmem:[#allocation8 + $0x128] sm:$0xff]
        %v601 = vld [vmem:[#allocation8 + $0x130] sm:$0xff]
        %v602 = vld [vmem:[#allocation8 + $0x138] sm:$0xff]
        %v603 = vld [vmem:[#allocation8 + $0x140] sm:$0xff]
        %v604 = vld [vmem:[#allocation8 + $0x148] sm:$0xff]
        %v605 = vld [vmem:[#allocation8 + $0x150] sm:$0xff]
        %v606 = vld [vmem:[#allocation8 + $0x158] sm:$0xff]
        %v607 = vld [vmem:[#allocation8 + $0x160] sm:$0xff]
        %v608 = vld [vmem:[#allocation8 + $0x168] sm:$0xff]
        %v609 = vld [vmem:[#allocation8 + $0x170] sm:$0xff]
        %v610 = vld [vmem:[#allocation8 + $0x178] sm:$0xff]
        %v611 = vld [vmem:[#allocation8 + $0x180] sm:$0xff]
        %v612 = vld [vmem:[#allocation8 + $0x188] sm:$0xff]
        %v613 = vld [vmem:[#allocation8 + $0x190] sm:$0xff]
        %v614 = vld [vmem:[#allocation8 + $0x198] sm:$0xff]
        %v615 = vld [vmem:[#allocation8 + $0x1a0] sm:$0xff]
        %v616 = vld [vmem:[#allocation8 + $0x1a8] sm:$0xff]
        %v617 = vld [vmem:[#allocation8 + $0x1b0] sm:$0xff]
        %v618 = vld [vmem:[#allocation8 + $0x1b8] sm:$0xff]
        %v619 = vld [vmem:[#allocation8 + $0x1c0] sm:$0xff]
        %v620 = vld [vmem:[#allocation8 + $0x1c8] sm:$0xff]
        %v621 = vld [vmem:[#allocation8 + $0x1d0] sm:$0xff]
        %v622 = vld [vmem:[#allocation8 + $0x1d8] sm:$0xff]
        %v623 = vld [vmem:[#allocation8 + $0x1e0] sm:$0xff]
        %v624 = vld [vmem:[#allocation8 + $0x1e8] sm:$0xff]
        %v625 = vld [vmem:[#allocation8 + $0x1f0] sm:$0xff]
        %v626 = vld [vmem:[#allocation8 + $0x1f8] sm:$0xff]
        %v627 = vld [vmem:[%s5] sm:$0x3]
        %v629 = vperm.slane %v627, 0
        %v630 = vperm.slane %v627, 1
        %633 = vmatpush.msra.mxu0 %v593
        %634 = vmatpush.msra.mxu0 %v591
        %635 = vmatpush.msra.mxu0 %v589
        %636 = vmatpush.msra.mxu0 %v587
        %637 = vmatpush.msra.mxu0 %v585
        %638 = vmatpush.msra.mxu0 %v583
        %639 = vmatpush.msra.mxu0 %v581
        %640 = vmatpush.msra.mxu0 %v579
        %641 = vmatpush.msra.mxu0 %v577
        %642 = vmatpush.msra.mxu0 %v575
        %643 = vmatpush.msra.mxu0 %v573
        %644 = vmatpush.msra.mxu0 %v571
        %645 = vmatpush.msra.mxu0 %v569
        %646 = vmatpush.msra.mxu0 %v567
        %647 = vmatpush.msra.mxu0 %v565
        %648 = vmatpush.msra.mxu0 %v563
        %649 = vmatmul.f32.gmra.mxu0 %v561
        %v650 = vpop.f32.mrf.mxu0
        %v651 = vadd.f32 %v629, %v650
        %652 = vdwg.mxu0
        %653 = vmatpush.msra.mxu0 %v625
        %654 = vmatpush.msra.mxu0 %v623
        %655 = vmatpush.msra.mxu0 %v621
        %656 = vmatpush.msra.mxu0 %v619
        %657 = vmatpush.msra.mxu0 %v617
        %658 = vmatpush.msra.mxu0 %v615
        %659 = vmatpush.msra.mxu0 %v613
        %660 = vmatpush.msra.mxu0 %v611
        %661 = vmatpush.msra.mxu0 %v609
        %662 = vmatpush.msra.mxu0 %v607
        %663 = vmatpush.msra.mxu0 %v605
        %664 = vmatpush.msra.mxu0 %v603
        %665 = vmatpush.msra.mxu0 %v601
        %666 = vmatpush.msra.mxu0 %v599
        %667 = vmatpush.msra.mxu0 %v597
        %668 = vmatpush.msra.mxu0 %v595
        %669 = vmatmul.f32.gmra.mxu0 %v562
        %v670 = vpop.f32.mrf.mxu0
        %v671 = vadd.f32 %v651, %v670
        %672 = vdwg.mxu0
        %673 = vmatpush.msra.mxu0 %v594
        %674 = vmatpush.msra.mxu0 %v592
        %675 = vmatpush.msra.mxu0 %v590
        %676 = vmatpush.msra.mxu0 %v588
        %677 = vmatpush.msra.mxu0 %v586
        %678 = vmatpush.msra.mxu0 %v584
        %679 = vmatpush.msra.mxu0 %v582
        %680 = vmatpush.msra.mxu0 %v580
        %681 = vmatpush.msra.mxu0 %v578
        %682 = vmatpush.msra.mxu0 %v576
        %683 = vmatpush.msra.mxu0 %v574
        %684 = vmatpush.msra.mxu0 %v572
        %685 = vmatpush.msra.mxu0 %v570
        %686 = vmatpush.msra.mxu0 %v568
        %687 = vmatpush.msra.mxu0 %v566
        %688 = vmatpush.msra.mxu0 %v564
        %689 = vmatmul.f32.gmra.mxu0 %v561
        %v690 = vpop.f32.mrf.mxu0
        %v691 = vadd.f32 %v630, %v690
        %692 = vdwg.mxu0
        %693 = vmatpush.msra.mxu0 %v626
        %694 = vmatpush.msra.mxu0 %v624
        %695 = vmatpush.msra.mxu0 %v622
        %696 = vmatpush.msra.mxu0 %v620
        %697 = vmatpush.msra.mxu0 %v618
        %698 = vmatpush.msra.mxu0 %v616
        %699 = vmatpush.msra.mxu0 %v614
        %700 = vmatpush.msra.mxu0 %v612
        %701 = vmatpush.msra.mxu0 %v610
        %702 = vmatpush.msra.mxu0 %v608
        %703 = vmatpush.msra.mxu0 %v606
        %704 = vmatpush.msra.mxu0 %v604
        %705 = vmatpush.msra.mxu0 %v602
        %706 = vmatpush.msra.mxu0 %v600
        %707 = vmatpush.msra.mxu0 %v598
        %708 = vmatpush.msra.mxu0 %v596
        %709 = vmatmul.f32.gmra.mxu0 %v562
        %v710 = vpop.f32.mrf.mxu0
        %v711 = vadd.f32 %v691, %v710
        %712 = vdwg.mxu0
        %v713 = vadd.f32 %v559, %v711
        %v714 = vld [vmem:[%s367] sm:$0xff]
        %v715 = vld [vmem:[%s367 + $0x8] sm:$0xff]
        %v716 = vld [vmem:[%s367 + $0x10] sm:$0xff]
        %v717 = vld [vmem:[%s367 + $0x18] sm:$0xff]
        %v718 = vld [vmem:[%s367 + $0x20] sm:$0xff]
        %v719 = vld [vmem:[%s367 + $0x28] sm:$0xff]
        %v720 = vld [vmem:[%s367 + $0x30] sm:$0xff]
        %v721 = vld [vmem:[%s367 + $0x38] sm:$0xff]
        %v722 = vld [vmem:[%s367 + $0x40] sm:$0xff]
        %v723 = vld [vmem:[%s367 + $0x48] sm:$0xff]
        %v724 = vld [vmem:[%s367 + $0x50] sm:$0xff]
        %v725 = vld [vmem:[%s367 + $0x58] sm:$0xff]
        %v726 = vld [vmem:[%s367 + $0x60] sm:$0xff]
        %v727 = vld [vmem:[%s367 + $0x68] sm:$0xff]
        %v728 = vld [vmem:[%s367 + $0x70] sm:$0xff]
        %v729 = vld [vmem:[%s367 + $0x78] sm:$0xff]
        %v730 = vld [vmem:[%s367 + $0x80] sm:$0xff]
        %v731 = vld [vmem:[%s367 + $0x88] sm:$0xff]
        %v732 = vld [vmem:[%s367 + $0x90] sm:$0xff]
        %v733 = vld [vmem:[%s367 + $0x98] sm:$0xff]
        %v734 = vld [vmem:[%s367 + $0xa0] sm:$0xff]
        %v735 = vld [vmem:[%s367 + $0xa8] sm:$0xff]
        %v736 = vld [vmem:[%s367 + $0xb0] sm:$0xff]
        %v737 = vld [vmem:[%s367 + $0xb8] sm:$0xff]
        %v738 = vld [vmem:[%s367 + $0xc0] sm:$0xff]
        %v739 = vld [vmem:[%s367 + $0xc8] sm:$0xff]
        %v740 = vld [vmem:[%s367 + $0xd0] sm:$0xff]
        %v741 = vld [vmem:[%s367 + $0xd8] sm:$0xff]
        %v742 = vld [vmem:[%s367 + $0xe0] sm:$0xff]
        %v743 = vld [vmem:[%s367 + $0xe8] sm:$0xff]
        %v744 = vld [vmem:[%s367 + $0xf0] sm:$0xff]
        %v745 = vld [vmem:[%s367 + $0xf8] sm:$0xff]
        %746 = vmatpush.msra.mxu0 %v729
        %747 = vmatpush.msra.mxu0 %v728
        %748 = vmatpush.msra.mxu0 %v727
        %749 = vmatpush.msra.mxu0 %v726
        %750 = vmatpush.msra.mxu0 %v725
        %751 = vmatpush.msra.mxu0 %v724
        %752 = vmatpush.msra.mxu0 %v723
        %753 = vmatpush.msra.mxu0 %v722
        %754 = vmatpush.msra.mxu0 %v721
        %755 = vmatpush.msra.mxu0 %v720
        %756 = vmatpush.msra.mxu0 %v719
        %757 = vmatpush.msra.mxu0 %v718
        %758 = vmatpush.msra.mxu0 %v717
        %759 = vmatpush.msra.mxu0 %v716
        %760 = vmatpush.msra.mxu0 %v715
        %761 = vmatpush.msra.mxu0 %v714
        %762 = vmatmul.f32.gmra.mxu0 %v519
        %v763 = vpop.f32.mrf.mxu0
        %v764 = vadd.f32 %v713, %v763
        %765 = vdwg.mxu0
        %766 = vmatpush.msra.mxu0 %v745
        %767 = vmatpush.msra.mxu0 %v744
        %768 = vmatpush.msra.mxu0 %v743
        %769 = vmatpush.msra.mxu0 %v742
        %770 = vmatpush.msra.mxu0 %v741
        %771 = vmatpush.msra.mxu0 %v740
        %772 = vmatpush.msra.mxu0 %v739
        %773 = vmatpush.msra.mxu0 %v738
        %774 = vmatpush.msra.mxu0 %v737
        %775 = vmatpush.msra.mxu0 %v736
        %776 = vmatpush.msra.mxu0 %v735
        %777 = vmatpush.msra.mxu0 %v734
        %778 = vmatpush.msra.mxu0 %v733
        %779 = vmatpush.msra.mxu0 %v732
        %780 = vmatpush.msra.mxu0 %v731
        %781 = vmatpush.msra.mxu0 %v730
        %782 = vmatmul.f32.gmra.mxu0 %v671
        %v783 = vpop.f32.mrf.mxu0
        %v784 = vadd.f32 %v764, %v783
        %785 = vdwg.mxu0
        %786 = vst [vmem:[%s408] sm:$0xff] %v784
        %s787 = sand.u32 %s198, 1
        %s788 = scalar_lea.sflag [#allocation4], %s787
        %s789 = sand.u32 %s198, 1
        %s790 = smul.addr %s789, 8
        %s791 = scalar_lea.vmem [#allocation11], %s790
        // Predicated region
        $region69: #{tpu_custom_call.1} parent=47 // pred_check
          %p792 = pneg %p208
        $region70: #{tpu_custom_call.1} parent=47 // pred_check_branch
          %794 = sbr.rel (%p792) target = $region72
        $region71: #{tpu_custom_call.1} parent=47 // pred_region
          %796 = vsyncadd %s788, 0
          %s797 = smul.addr %s28, 8
          %s798 = scalar_lea.hbm %s7, %s797
          %s800 = sshll.u32 %s791, 4
          %s801 = int_to_ptr.vmem [resolvable:$true] %s800
          %s802 = sshll.u32 %s798, 4
          %s803 = int_to_ptr.hbm [resolvable:$true] %s802
          %805 = dma.vmem_to_hbm [thread:$0]  %s801, 128, %s803, %s788
        $region72: #{tpu_custom_call.1} parent=47 // pred_fallthru
          _
      $region48: #{tpu_custom_call.1} parent=5 // pred_fallthru
        _
      %p806 = scmp.le.s32.totalorder 2, %s23
      // Predicated region
      $region73: #{tpu_custom_call.1} parent=5 // pred_check
        %p807 = pneg %p806
      $region74: #{tpu_custom_call.1} parent=5 // pred_check_branch
        %809 = sbr.rel (%p807) target = $region76
      $region75: #{tpu_custom_call.1} parent=5 // pred_region
        %s810 = ssub.s32 %s23, 2
        // Predicated region
        $region77: #{tpu_custom_call.1} parent=75 // pred_check
          %p811 = pneg %p214
        $region78: #{tpu_custom_call.1} parent=75 // pred_check_branch
          %813 = sbr.rel (%p811) target = $region80
        $region79: #{tpu_custom_call.1} parent=75 // pred_region
          %s814 = sand.u32 %s199, 1
          %s815 = scalar_lea.sflag [#allocation4], %s814
          %s816 = sand.u32 %s199, 1
          %s817 = smul.addr %s816, 8
          %s818 = scalar_lea.vmem [#allocation11], %s817
          %820 = dma.done %s815, 128
        $region80: #{tpu_custom_call.1} parent=75 // pred_fallthru
          _
      $region76: #{tpu_custom_call.1} parent=5 // pred_fallthru
        _
    $region6: #{tpu_custom_call.1} parent=1 // loop_footer
      %s27 = sadd.s32 1, %s23
    $region7: #{tpu_custom_call.1} parent=1 // loop_footer_branch
      %22 = sbr.rel target = $region3
    $region8: #{tpu_custom_call.1} parent=1 // loop_exit
      _
    %821 = vsyncpa [#allocation3], 1
    %s822 = scalar_lea.sflag [#allocation3], 1
    %823 = vsyncpa %s822, 1
    %824 = vsyncpa [#allocation6], 1
    %s825 = scalar_lea.sflag [#allocation6], 1
    %826 = vsyncpa %s825, 1
    %827 = vsyncpa [#allocation9], 1
    %828 = vsyncpa [#allocation4], 1
    %s829 = scalar_lea.sflag [#allocation4], 1
    %830 = vsyncpa %s829, 1

</llo_original>
